<compile_context>
chip_gen: v5e
topology: v5e:2x2
jax: 0.10.0
libtpu: 0.0.40
codegen_flags: <defaults>
</compile_context>

<pallas_src>
import functools

import jax
import jax.numpy as jnp
from jax import lax
from jax.experimental import pallas as pl
from jax.experimental.pallas import tpu as pltpu


_DMA_WINDOW = 8  # in-flight row copies per block on the gather path


def _round_up(x: int, m: int) -> int:
    return ((x + m - 1) // m) * m


def _sublane_tile(dtype) -> int:
    # (8,128) native tile for 32-bit, (16,128) for bf16, (32,128) for int8/fp8.
    return max(8, 32 // jnp.dtype(dtype).itemsize)


def _vmem_limit_bytes() -> int:
    # Generation-aware scoped-VMEM limit: ~half of physical VMEM.
    # 128 MiB parts (v5e/v6e) -> 64 MiB, 64 MiB parts (v7x) -> 32 MiB.
    try:
        cap = int(pltpu.get_tpu_info().vmem_capacity_bytes)
    except Exception:
        cap = 64 * 1024 * 1024
    return max(32 * 1024 * 1024, min(cap // 2, 96 * 1024 * 1024))


# ---------------------------------------------------------------------------
# Path 1: one-hot matmul on the MXU, V-tiled (bounded VMEM for any vocab).
# ---------------------------------------------------------------------------
def _embedding_onehot_kernel(v_block, precision, ids_ref, emb_ref, out_ref,
                             acc_ref):
    """ids_ref: VMEM i32[T,1]; emb_ref: VMEM [v_block,Dp]; out_ref: [T,Dp]."""
    k = pl.program_id(1)

    @pl.when(k == 0)
    def _():
        acc_ref[...] = jnp.zeros_like(acc_ref)

    ids = ids_ref[...]                                            # (T, 1)
    base = k * v_block
    iota = base + lax.broadcasted_iota(jnp.int32, (1, v_block), 1)  # (1, vb)
    one_hot = (ids == iota).astype(emb_ref.dtype)                 # (T, vb)
    acc_ref[...] += jnp.dot(one_hot, emb_ref[...],
                            precision=precision,
                            preferred_element_type=jnp.float32)

    @pl.when(k == pl.num_programs(1) - 1)
    def _():
        out_ref[...] = acc_ref[...].astype(out_ref.dtype)


def _lookup_onehot(ids_flat, emb, tok_block, v_block, vmem_limit):
    n_pad = ids_flat.shape[0]
    V_pad, Dp = emb.shape
    dsize = jnp.dtype(emb.dtype).itemsize
    # HIGHEST (multi-pass MXU) only when needed for f32 exactness; bf16/int
    # one-hot gathers are already exact at DEFAULT precision.
    precision = (lax.Precision.HIGHEST if emb.dtype == jnp.float32
                 else lax.Precision.DEFAULT)
    grid = (n_pad // tok_block, V_pad // v_block)
    cost = pl.CostEstimate(
        flops=int(2 * n_pad * V_pad * Dp),
        transcendentals=0,
        bytes_accessed=int(grid[0] * V_pad * Dp * dsize
                           + n_pad * Dp * dsize + n_pad * 4),
    )
    return pl.pallas_call(
        functools.partial(_embedding_onehot_kernel, v_block, precision),
        out_shape=jax.ShapeDtypeStruct((n_pad, Dp), emb.dtype),
        grid=grid,
        in_specs=[
            pl.BlockSpec((tok_block, 1), lambda i, k: (i, 0)),
            pl.BlockSpec((v_block, Dp), lambda i, k: (k, 0)),
        ],
        out_specs=pl.BlockSpec((tok_block, Dp), lambda i, k: (i, 0)),
        scratch_shapes=[pltpu.VMEM((tok_block, Dp), jnp.float32)],
        compiler_params=pltpu.CompilerParams(
            dimension_semantics=("parallel", "arbitrary"),
            vmem_limit_bytes=vmem_limit,
        ),
        cost_estimate=cost,
    )(ids_flat.reshape(n_pad, 1), emb)


# ---------------------------------------------------------------------------
# Path 2: table stays in HBM, per-token row DMAs (O(N*D) bytes), sliding window.
# ---------------------------------------------------------------------------
def _embedding_dma_kernel(tok_block, window, ids_ref, emb_hbm, out_ref, sems):
    """ids_ref: SMEM i32[T]; emb_hbm: HBM [V, D]; out_ref: VMEM [T, D]."""
    nw = min(window, tok_block)

    def issue(j):
        tok = ids_ref[j]
        pltpu.make_async_copy(emb_hbm.at[tok], out_ref.at[j],
                              sems.at[j % nw]).start()

    def prime(j, c):
        issue(j)
        return c

    lax.fori_loop(0, nw, prime, 0, unroll=True)

    def body(j, c):
        # Issue copy j+nw before waiting on copy j (keeps the scalar SMEM read
        # ahead of the .wait() and keeps ~nw descriptors in flight).
        @pl.when(j + nw < tok_block)
        def _():
            issue(j + nw)
        # Dummy source index: .wait() only needs the transfer shape + sem.
        pltpu.make_async_copy(emb_hbm.at[0], out_ref.at[j],
                              sems.at[j % nw]).wait()
        return c

    lax.fori_loop(0, tok_block, body, 0, unroll=min(8, tok_block))


def _lookup_dma(ids_flat, emb, tok_block, vmem_limit):
    n_pad = ids_flat.shape[0]
    V, D = emb.shape
    dsize = jnp.dtype(emb.dtype).itemsize
    cost = pl.CostEstimate(
        flops=0,
        transcendentals=0,
        bytes_accessed=int(2 * n_pad * D * dsize + n_pad * 4),
    )
    return pl.pallas_call(
        functools.partial(_embedding_dma_kernel, tok_block, _DMA_WINDOW),
        out_shape=jax.ShapeDtypeStruct((n_pad, D), emb.dtype),
        grid=(n_pad // tok_block,),
        in_specs=[
            # Per-block ids in SMEM (addresses); no whole-array scalar prefetch.
            pl.BlockSpec((tok_block,), lambda i: (i,),
                         memory_space=pltpu.MemorySpace.SMEM),
            # Table stays in HBM; rows are DMA'd straight into the out block.
            pl.BlockSpec(memory_space=pl.ANY),
        ],
        out_specs=pl.BlockSpec((tok_block, D), lambda i: (i, 0)),
        scratch_shapes=[pltpu.SemaphoreType.DMA((_DMA_WINDOW,))],
        compiler_params=pltpu.CompilerParams(
            dimension_semantics=("parallel",),
            vmem_limit_bytes=vmem_limit,
        ),
        cost_estimate=cost,
    )(ids_flat, emb)


# ---------------------------------------------------------------------------
# Public wrapper (matches Embedding.forward semantics).
# ---------------------------------------------------------------------------
def embedding_lookup(token_ids, emb, *, tok_block: int = 256,
                     force_dma: bool = False, force_onehot: bool = False):
    """token_ids: integer array (any shape); emb: (V, D). Returns ids.shape+(D,)."""
    assert not (force_dma and force_onehot)
    V, D = emb.shape
    orig_shape = token_ids.shape
    dsize = jnp.dtype(emb.dtype).itemsize
    sub = _sublane_tile(emb.dtype)
    vmem_limit = _vmem_limit_bytes()

    # TODO(synk): PyTorch raises on out-of-range ids; we clamp instead of
    # risking a silent OOB read / faulting DMA.
    ids_flat = jnp.clip(token_ids.reshape(-1).astype(jnp.int32), 0, V - 1)
    N = int(ids_flat.shape[0])

    # Token block: default 256 (amortizes grid-step overhead, MXU-friendly),
    # rounded to the table dtype's sublane tile, never larger than needed.
    tok_block = max(sub, min(_round_up(tok_block, sub), _round_up(N, sub)))

    # ---- one-hot path tiling (V-tiled, VMEM-budgeted) ----
    Dp = _round_up(D, 128)
    v_round = 128 if V >= 128 else sub
    V_ceil = _round_up(V, v_round)
    v_block = min(V_ceil, 1024)
    tok_oh = tok_block
    budget = (vmem_limit * 3) // 5

    def footprint(tb, vb):
        return (2 * vb * Dp * dsize        # table slice, double-buffered
                + 2 * tb * Dp * dsize      # output block, double-buffered
                + tb * Dp * 4              # f32 accumulator scratch
                + tb * vb * 4              # one-hot intermediate
                + 2 * tb * 128 * 4)        # ids block (lane-padded), 2 buffers

    while footprint(tok_oh, v_block) > budget and v_block > v_round:
        v_block = max(v_round, ((v_block // 2) // v_round) * v_round)
    while footprint(tok_oh, v_block) > budget and tok_oh > sub:
        tok_oh = max(sub, ((tok_oh // 2) // sub) * sub)
    onehot_fits = footprint(tok_oh, v_block) <= vmem_limit

    # ---- path selection ----
    # one-hot path streams the padded table once per token block; DMA path does
    # one row-sized descriptor per token (descriptor-bound below ~2 KiB rows).
    n_blocks = pl.cdiv(max(N, 1), tok_oh)
    onehot_bytes = n_blocks * V_ceil * Dp * dsize + n_blocks * tok_oh * Dp * dsize
    dma_bytes = N * (max(D * dsize, 2048) + D * dsize)
    use_dma = force_dma or (not force_onehot and
                            (not onehot_fits or dma_bytes < onehot_bytes))

    if use_dma:
        n_pad = _round_up(N, tok_block)
        ids_p = jnp.pad(ids_flat, (0, n_pad - N)) if n_pad != N else ids_flat
        out = _lookup_dma(ids_p, emb, tok_block, vmem_limit)
        return out[:N].reshape(*orig_shape, D)

    # one-hot / MXU path
    n_pad = _round_up(N, tok_oh)
    ids_p = jnp.pad(ids_flat, (0, n_pad - N)) if n_pad != N else ids_flat
    V_pad = _round_up(V, v_block)
    emb_p = emb
    if (V_pad, Dp) != (V, D):
        # Zero-pad (never garbage: 0 * NaN would poison the one-hot matmul).
        emb_p = jnp.pad(emb, ((0, V_pad - V), (0, Dp - D)))
    out = _lookup_onehot(ids_p, emb_p, tok_oh, v_block, vmem_limit)
    return out[:N, :D].reshape(*orig_shape, D)


def init_embedding(key, num_embeddings: int, embedding_dim: int,
                   dtype=jnp.float32):
    # Matches torch.nn.init.trunc_normal_(mean=0, std=1, a=-3, b=3).
    return jax.random.truncated_normal(
        key, -3.0, 3.0, (num_embeddings, embedding_dim)).astype(dtype)


if __name__ == "__main__":
    key = jax.random.PRNGKey(0)
    k_emb, k_ids_a, k_ids_b = jax.random.split(key, 3)

    num_embeddings = 64
    embedding_dim = 128

    emb = init_embedding(k_emb, num_embeddings, embedding_dim)

    # (2, 8): block divides evenly; (3, 5): exercises the padding path.
    ids_a = jax.random.randint(k_ids_a, (2, 8), 0, num_embeddings, dtype=jnp.int32)
    ids_b = jax.random.randint(k_ids_b, (3, 5), 0, num_embeddings, dtype=jnp.int32)

    for ids in (ids_a, ids_b):
        ref = emb[ids]

        # V-tiled one-hot (MXU) path.
        out = jax.block_until_ready(embedding_lookup(ids, emb, force_onehot=True))
        assert out.shape == ids.shape + (embedding_dim,)
        assert out.dtype == emb.dtype
        assert jnp.allclose(out, ref, rtol=1e-6, atol=1e-6)

        # HBM row-gather (sliding-window DMA) path -- exact byte copies.
        out_dma = jax.block_until_ready(embedding_lookup(ids, emb, force_dma=True))
        assert out_dma.shape == ids.shape + (embedding_dim,)
        assert jnp.array_equal(out_dma, ref)

        # Auto path selection.
        out_auto = jax.block_until_ready(embedding_lookup(ids, emb))
        assert jnp.allclose(out_auto, ref, rtol=1e-6, atol=1e-6)

    # bf16 table: exercises the 16-row sublane tile + DEFAULT-precision path.
    emb_bf = emb.astype(jnp.bfloat16)
    ref_bf = emb_bf[ids_a]
    out_bf = jax.block_until_ready(
        embedding_lookup(ids_a, emb_bf, force_onehot=True))
    assert jnp.array_equal(out_bf, ref_bf)
    out_bf_dma = jax.block_until_ready(
        embedding_lookup(ids_a, emb_bf, force_dma=True))
    assert jnp.array_equal(out_bf_dma, ref_bf)

    print("KERNEL_OK")
</pallas_src>

<mosaic_0001>
module attributes {stable_mosaic.version = 11 : i64} {
  func.func @_embedding_onehot_kernel(%arg0: i32, %arg1: i32, %arg2: memref<16x1xi32, #tpu.memory_space<vmem>>, %arg3: memref<64x128xf32, #tpu.memory_space<vmem>>, %arg4: memref<16x128xf32, #tpu.memory_space<vmem>>, %arg5: memref<16x128xf32, #tpu.memory_space<vmem>>) attributes {dimension_semantics = [#tpu.dimension_semantics<parallel>, #tpu.dimension_semantics<arbitrary>], iteration_bounds = array<i64: 1, 1>, scalar_prefetch = 0 : i64, scratch_operands = 1 : i64, tpu.core_type = #tpu.core_type<tc>, window_params = [{transform_indices = @transform_0, window_bounds = array<i64: 16, 1>}, {transform_indices = @transform_1, window_bounds = array<i64: 64, 128>}, {transform_indices = @transform_2, window_bounds = array<i64: 16, 128>}]} {
    %c0_i32 = arith.constant 0 : i32
    %0 = arith.cmpi eq, %arg1, %c0_i32 : i32
    %1 = arith.extui %0 : i1 to i32
    %c0_i32_0 = arith.constant 0 : i32
    %2 = arith.cmpi ne, %1, %c0_i32_0 : i32
    scf.if %2 {
      %cst_10 = arith.constant 0.000000e+00 : f32
      %21 = vector.broadcast %cst_10 : f32 to vector<16x128xf32>
      %c0_11 = arith.constant 0 : index
      %c0_12 = arith.constant 0 : index
      %22 = vector.load %arg5[%c0_11, %c0_12] : memref<16x128xf32, #tpu.memory_space<vmem>>, vector<16x128xf32>
      tpu.vector_store %arg5[%c0_11, %c0_12], %21 {strides = array<i32>} : memref<16x128xf32, #tpu.memory_space<vmem>>, vector<16x128xf32>,
    } else {
    }
    %c0 = arith.constant 0 : index
    %c0_1 = arith.constant 0 : index
    %3 = vector.load %arg2[%c0, %c0_1] : memref<16x1xi32, #tpu.memory_space<vmem>>, vector<16x1xi32>
    %c64_i32 = arith.constant 64 : i32
    %4 = arith.muli %arg1, %c64_i32 : i32
    %5 = tpu.iota {dimensions = array<i32: 1>} : vector<1x64xi32>
    %6 = vector.broadcast %4 : i32 to vector<1x64xi32>
    %7 = arith.addi %6, %5 : vector<1x64xi32>
    %8 = vector.broadcast %3 : vector<16x1xi32> to vector<16x64xi32>
    %9 = vector.broadcast %7 : vector<1x64xi32> to vector<16x64xi32>
    %10 = arith.cmpi eq, %8, %9 : vector<16x64xi32>
    %11 = arith.extui %10 : vector<16x64xi1> to vector<16x64xi32>
    %12 = arith.sitofp %11 : vector<16x64xi32> to vector<16x64xf32>
    %c0_2 = arith.constant 0 : index
    %c0_3 = arith.constant 0 : index
    %13 = vector.load %arg5[%c0_2, %c0_3] : memref<16x128xf32, #tpu.memory_space<vmem>>, vector<16x128xf32>
    %c0_4 = arith.constant 0 : index
    %c0_5 = arith.constant 0 : index
    %14 = vector.load %arg3[%c0_4, %c0_5] : memref<64x128xf32, #tpu.memory_space<vmem>>, vector<64x128xf32>
    %cst = arith.constant dense<0.000000e+00> : vector<16x128xf32>
    %15 = tpu.matmul %12, %14, %cst {dimension_numbers = #tpu.dot_dimension_numbers<[1], [0], [0], [1], [0, 0, 1, 1], [], []>, precision = #tpu.contract_precision<fp32>} : vector<16x64xf32>, vector<64x128xf32>, vector<16x128xf32> -> vector<16x128xf32>
    %16 = arith.addf %13, %15 : vector<16x128xf32>
    %c0_6 = arith.constant 0 : index
    %c0_7 = arith.constant 0 : index
    %17 = vector.load %arg5[%c0_6, %c0_7] : memref<16x128xf32, #tpu.memory_space<vmem>>, vector<16x128xf32>
    tpu.vector_store %arg5[%c0_6, %c0_7], %16 {strides = array<i32>} : memref<16x128xf32, #tpu.memory_space<vmem>>, vector<16x128xf32>,
    %c0_i32_8 = arith.constant 0 : i32
    %18 = arith.cmpi eq, %arg1, %c0_i32_8 : i32
    %19 = arith.extui %18 : i1 to i32
    %c0_i32_9 = arith.constant 0 : i32
    %20 = arith.cmpi ne, %19, %c0_i32_9 : i32
    scf.if %20 {
      %c0_10 = arith.constant 0 : index
      %c0_11 = arith.constant 0 : index
      %21 = vector.load %arg5[%c0_10, %c0_11] : memref<16x128xf32, #tpu.memory_space<vmem>>, vector<16x128xf32>
      %c0_12 = arith.constant 0 : index
      %c0_13 = arith.constant 0 : index
      %22 = vector.load %arg4[%c0_12, %c0_13] : memref<16x128xf32, #tpu.memory_space<vmem>>, vector<16x128xf32>
      tpu.vector_store %arg4[%c0_12, %c0_13], %21 {strides = array<i32>} : memref<16x128xf32, #tpu.memory_space<vmem>>, vector<16x128xf32>,
    } else {
    }
    return
  }
  func.func @transform_0(%arg0: i32, %arg1: i32) -> (i32, i32) {
    %c0_i32 = arith.constant 0 : i32
    %c0_i32_0 = arith.constant 0 : i32
    return %arg0, %c0_i32 : i32, i32
  }
  func.func @transform_1(%arg0: i32, %arg1: i32) -> (i32, i32) {
    %c0_i32 = arith.constant 0 : i32
    %c0_i32_0 = arith.constant 0 : i32
    return %arg1, %c0_i32 : i32, i32
  }
  func.func @transform_2(%arg0: i32, %arg1: i32) -> (i32, i32) {
    %c0_i32 = arith.constant 0 : i32
    %c0_i32_0 = arith.constant 0 : i32
    return %arg0, %c0_i32 : i32, i32
  }
}

</mosaic_0001>

<llo_original>
// kernel: tpu_custom_call.1
$region0: #{tpu_custom_call.1}
  #allocation0 [shape = 'u32[]', space=smem, size = 0x4, offset = 0x4, fixed_abs, tag = 'smem constant byte address 0x4 - core index']
  #allocation1 [shape = 'u32[72,128]{1,0:T(1,128)}', space=vmem, size = 0x9000, scoped, tag = 'internal scratch']
  #allocation2 [shape = 'f32[16,128]{1,0:T(8,128)}', space=vmem, size = 0x2000, scoped, tag = 'scratch operand']
  %s0 = inlined_call_operand.vmem [shape: s32[16,1], index: 0, kind: input, shape index: {}]
  %s1 = inlined_call_operand.hbm [shape: f32[64,128], index: 1, kind: input, shape index: {}]
  %s2 = inlined_call_operand.hbm [shape: f32[16,128], index: 2, kind: output, shape index: {}]
  %s3 = sld [smem:[#allocation0]]
  $region30: #{tpu_custom_call.1} parent=0
    _
  %s5 = ssub.s32 1, %s3
  %s6 = scalar_select 0, %s5, %s3
  $region1: #{tpu_custom_call.1} parent=0
    #allocation3 [shape = 'u8[32768]{0}', space=vmem, size = 0x8000, scoped, tag = 'input window, operand 1, single buffered']
    #allocation4 [shape = 's32[1]{0}', space=sflag, size = 0x4, scoped, tag = 'scoped memory for tpu_custom_call.1']
    #allocation5 [shape = 's32[1]{0}', space=sflag, size = 0x4, scoped, tag = 'scoped memory for tpu_custom_call.1']
    #allocation6 [shape = 'u8[8192]{0}', space=vmem, size = 0x2000, scoped, tag = 'output window, operand 0, single buffered']
    %7 = vsyncpa [#allocation4], 0
    %8 = vsyncpa [#allocation5], 0
    // Predicated region
    $region2: #{tpu_custom_call.1} parent=1 // pred_check
      _
    $region3: #{tpu_custom_call.1} parent=1 // pred_check_branch
      %10 = sbr.rel (0) target = $region5
    $region4: #{tpu_custom_call.1} parent=1 // pred_region
      _
    $region5: #{tpu_custom_call.1} parent=1 // pred_fallthru
      _
    // Predicated region
    $region6: #{tpu_custom_call.1} parent=1 // pred_check
      _
    $region7: #{tpu_custom_call.1} parent=1 // pred_check_branch
      %12 = sbr.rel (0) target = $region9
    $region8: #{tpu_custom_call.1} parent=1 // pred_region
      %14 = vsyncadd [#allocation4], 0
      %s15 = sshll.u32 %s1, 4
      %s16 = int_to_ptr.hbm [resolvable:$true] %s15
      %s17 = sshll.u32 [#allocation3], 4
      %s18 = int_to_ptr.vmem [resolvable:$true] %s17
      %23 = dma.hbm_to_vmem [thread:$0]  %s16, 1024, %s18, [#allocation4], 128, 128, 8
    $region9: #{tpu_custom_call.1} parent=1 // pred_fallthru
      _
    // Predicated region
    $region10: #{tpu_custom_call.1} parent=1 // pred_check
      _
    $region11: #{tpu_custom_call.1} parent=1 // pred_check_branch
      %25 = sbr.rel (0) target = $region13
    $region12: #{tpu_custom_call.1} parent=1 // pred_region
      %27 = dma.done [#allocation4], 1024
    $region13: #{tpu_custom_call.1} parent=1 // pred_fallthru
      _
    %p28 = scmp.eq.s32.totalorder 0, 0
    // Predicated region
    $region14: #{tpu_custom_call.1} parent=1 // pred_check
      %p29 = pneg %p28
    $region15: #{tpu_custom_call.1} parent=1 // pred_check_branch
      %31 = sbr.rel (%p29) target = $region17
    $region16: #{tpu_custom_call.1} parent=1 // pred_region
      %32 = vst [vmem:[#allocation2] sm:$0xff] 0.0
      %33 = vst [vmem:[#allocation2 + $0x8] sm:$0xff] 0.0
    $region17: #{tpu_custom_call.1} parent=1 // pred_fallthru
      _
    %v34 = vld [vmem:[%s0] sm:$0xff]
    %v35 = vld [vmem:[%s0 + $0x8] sm:$0xff]
    %s36 = smul.u32 0, 64
    %v37 = vlaneseq
    %v38 = vand.u32 %v37, 127
    %v39 = vstv %s36
    %v40 = vadd.s32 %v39, %v38
    %41 = vset.pattern.permute.xlu0 0
    %42 = vperm.xlu0 %41, %v34
    %v43 = vpop.permute.xlu0 %42
    %44 = vset.pattern.permute.xlu0 0
    %45 = vperm.xlu0 %44, %v35
    %v46 = vpop.permute.xlu0 %45
    %vm47 = vcmp.eq.s32.totalorder %v43, %v40
    %vm48 = vcmp.eq.s32.totalorder %v46, %v40
    %v49 = vsel %vm47, 1, 0
    %v50 = vsel %vm48, 1, 0
    %v51 = vcvt.s32.f32 %v49
    %v52 = vcvt.s32.f32 %v50
    %v53 = vld [vmem:[#allocation2] sm:$0xff]
    %v54 = vld [vmem:[#allocation2 + $0x8] sm:$0xff]
    %v55 = vld [vmem:[#allocation3] sm:$0xff]
    %v56 = vld [vmem:[#allocation3 + $0x8] sm:$0xff]
    %v57 = vld [vmem:[#allocation3 + $0x10] sm:$0xff]
    %v58 = vld [vmem:[#allocation3 + $0x18] sm:$0xff]
    %v59 = vld [vmem:[#allocation3 + $0x20] sm:$0xff]
    %v60 = vld [vmem:[#allocation3 + $0x28] sm:$0xff]
    %v61 = vld [vmem:[#allocation3 + $0x30] sm:$0xff]
    %v62 = vld [vmem:[#allocation3 + $0x38] sm:$0xff]
    %vm63 = vcmask 523264
    %v65 = vsel %vm63, %v51, 0
    %v68 = vsel %vm63, %v52, 0
    %70 = vmatpush.msra.mxu0 0.0
    %71 = vmatpush.msra.mxu0 0.0
    %72 = vmatpush.msra.mxu0 0.0
    %73 = vmatpush.msra.mxu0 0.0
    %74 = vmatpush.msra.mxu0 0.0
    %75 = vmatpush.msra.mxu0 0.0
    %76 = vmatpush.msra.mxu0 0.0
    %77 = vmatpush.msra.mxu0 0.0
    %v78 = vand.u32 %v62, 4294901760
    %79 = vmatpush.msra.mxu0 %v78
    %v80 = vand.u32 %v61, 4294901760
    %81 = vmatpush.msra.mxu0 %v80
    %v82 = vand.u32 %v60, 4294901760
    %83 = vmatpush.msra.mxu0 %v82
    %v84 = vand.u32 %v59, 4294901760
    %85 = vmatpush.msra.mxu0 %v84
    %v86 = vand.u32 %v58, 4294901760
    %87 = vmatpush.msra.mxu0 %v86
    %v88 = vand.u32 %v57, 4294901760
    %89 = vmatpush.msra.mxu0 %v88
    %v90 = vand.u32 %v56, 4294901760
    %91 = vmatpush.msra.mxu0 %v90
    %v92 = vand.u32 %v55, 4294901760
    %93 = vmatpush.msra.mxu0 %v92
    %v94 = vand.u32 %v65, 4294901760
    %v95 = vsub.f32 %v65, %v94
    %v96 = vand.u32 %v95, 4294901760
    %v97 = vsub.f32 %v95, %v96
    %v98 = vand.u32 %v97, 4294901760
    %99 = vmatmul.f32.gmra.mxu0 %v98
    %v100 = vpop.f32.mrf.mxu0
    %v101 = vadd.f32 0.0, %v100
    %v102 = vand.u32 %v68, 4294901760
    %v103 = vsub.f32 %v68, %v102
    %v104 = vand.u32 %v103, 4294901760
    %v105 = vsub.f32 %v103, %v104
    %v106 = vand.u32 %v105, 4294901760
    %107 = vmatmul.f32.gmra.mxu0 %v106
    %v108 = vpop.f32.mrf.mxu0
    %v109 = vadd.f32 0.0, %v108
    %110 = vdwg.mxu0
    %111 = vmatpush.msra.mxu0 0.0
    %112 = vmatpush.msra.mxu0 0.0
    %113 = vmatpush.msra.mxu0 0.0
    %114 = vmatpush.msra.mxu0 0.0
    %115 = vmatpush.msra.mxu0 0.0
    %116 = vmatpush.msra.mxu0 0.0
    %117 = vmatpush.msra.mxu0 0.0
    %118 = vmatpush.msra.mxu0 0.0
    %v119 = vand.u32 %v62, 4294901760
    %v120 = vsub.f32 %v62, %v119
    %v121 = vand.u32 %v120, 4294901760
    %v122 = vsub.f32 %v120, %v121
    %v123 = vand.u32 %v122, 4294901760
    %124 = vmatpush.msra.mxu0 %v123
    %v125 = vand.u32 %v61, 4294901760
    %v126 = vsub.f32 %v61, %v125
    %v127 = vand.u32 %v126, 4294901760
    %v128 = vsub.f32 %v126, %v127
    %v129 = vand.u32 %v128, 4294901760
    %130 = vmatpush.msra.mxu0 %v129
    %v131 = vand.u32 %v60, 4294901760
    %v132 = vsub.f32 %v60, %v131
    %v133 = vand.u32 %v132, 4294901760
    %v134 = vsub.f32 %v132, %v133
    %v135 = vand.u32 %v134, 4294901760
    %136 = vmatpush.msra.mxu0 %v135
    %v137 = vand.u32 %v59, 4294901760
    %v138 = vsub.f32 %v59, %v137
    %v139 = vand.u32 %v138, 4294901760
    %v140 = vsub.f32 %v138, %v139
    %v141 = vand.u32 %v140, 4294901760
    %142 = vmatpush.msra.mxu0 %v141
    %v143 = vand.u32 %v58, 4294901760
    %v144 = vsub.f32 %v58, %v143
    %v145 = vand.u32 %v144, 4294901760
    %v146 = vsub.f32 %v144, %v145
    %v147 = vand.u32 %v146, 4294901760
    %148 = vmatpush.msra.mxu0 %v147
    %v149 = vand.u32 %v57, 4294901760
    %v150 = vsub.f32 %v57, %v149
    %v151 = vand.u32 %v150, 4294901760
    %v152 = vsub.f32 %v150, %v151
    %v153 = vand.u32 %v152, 4294901760
    %154 = vmatpush.msra.mxu0 %v153
    %v155 = vand.u32 %v56, 4294901760
    %v156 = vsub.f32 %v56, %v155
    %v157 = vand.u32 %v156, 4294901760
    %v158 = vsub.f32 %v156, %v157
    %v159 = vand.u32 %v158, 4294901760
    %160 = vmatpush.msra.mxu0 %v159
    %v161 = vand.u32 %v55, 4294901760
    %v162 = vsub.f32 %v55, %v161
    %v163 = vand.u32 %v162, 4294901760
    %v164 = vsub.f32 %v162, %v163
    %v165 = vand.u32 %v164, 4294901760
    %166 = vmatpush.msra.mxu0 %v165
    %v167 = vand.u32 %v65, 4294901760
    %168 = vmatmul.f32.gmra.mxu0 %v167
    %v169 = vpop.f32.mrf.mxu0
    %v170 = vadd.f32 %v101, %v169
    %v171 = vand.u32 %v68, 4294901760
    %172 = vmatmul.f32.gmra.mxu0 %v171
    %v173 = vpop.f32.mrf.mxu0
    %v174 = vadd.f32 %v109, %v173
    %175 = vdwg.mxu0
    %176 = vmatpush.msra.mxu0 0.0
    %177 = vmatpush.msra.mxu0 0.0
    %178 = vmatpush.msra.mxu0 0.0
    %179 = vmatpush.msra.mxu0 0.0
    %180 = vmatpush.msra.mxu0 0.0
    %181 = vmatpush.msra.mxu0 0.0
    %182 = vmatpush.msra.mxu0 0.0
    %183 = vmatpush.msra.mxu0 0.0
    %v184 = vand.u32 %v62, 4294901760
    %v185 = vsub.f32 %v62, %v184
    %186 = vmatpush.msra.mxu0 %v185
    %v187 = vand.u32 %v61, 4294901760
    %v188 = vsub.f32 %v61, %v187
    %189 = vmatpush.msra.mxu0 %v188
    %v190 = vand.u32 %v60, 4294901760
    %v191 = vsub.f32 %v60, %v190
    %192 = vmatpush.msra.mxu0 %v191
    %v193 = vand.u32 %v59, 4294901760
    %v194 = vsub.f32 %v59, %v193
    %195 = vmatpush.msra.mxu0 %v194
    %v196 = vand.u32 %v58, 4294901760
    %v197 = vsub.f32 %v58, %v196
    %198 = vmatpush.msra.mxu0 %v197
    %v199 = vand.u32 %v57, 4294901760
    %v200 = vsub.f32 %v57, %v199
    %201 = vmatpush.msra.mxu0 %v200
    %v202 = vand.u32 %v56, 4294901760
    %v203 = vsub.f32 %v56, %v202
    %204 = vmatpush.msra.mxu0 %v203
    %v205 = vand.u32 %v55, 4294901760
    %v206 = vsub.f32 %v55, %v205
    %207 = vmatpush.msra.mxu0 %v206
    %v208 = vand.u32 %v65, 4294901760
    %v209 = vsub.f32 %v65, %v208
    %210 = vmatmul.f32.gmra.mxu0 %v209
    %v211 = vpop.f32.mrf.mxu0
    %v212 = vadd.f32 %v170, %v211
    %v213 = vand.u32 %v68, 4294901760
    %v214 = vsub.f32 %v68, %v213
    %215 = vmatmul.f32.gmra.mxu0 %v214
    %v216 = vpop.f32.mrf.mxu0
    %v217 = vadd.f32 %v174, %v216
    %218 = vdwg.mxu0
    %219 = vmatpush.msra.mxu0 0.0
    %220 = vmatpush.msra.mxu0 0.0
    %221 = vmatpush.msra.mxu0 0.0
    %222 = vmatpush.msra.mxu0 0.0
    %223 = vmatpush.msra.mxu0 0.0
    %224 = vmatpush.msra.mxu0 0.0
    %225 = vmatpush.msra.mxu0 0.0
    %226 = vmatpush.msra.mxu0 0.0
    %v227 = vand.u32 %v62, 4294901760
    %228 = vmatpush.msra.mxu0 %v227
    %v229 = vand.u32 %v61, 4294901760
    %230 = vmatpush.msra.mxu0 %v229
    %v231 = vand.u32 %v60, 4294901760
    %232 = vmatpush.msra.mxu0 %v231
    %v233 = vand.u32 %v59, 4294901760
    %234 = vmatpush.msra.mxu0 %v233
    %v235 = vand.u32 %v58, 4294901760
    %236 = vmatpush.msra.mxu0 %v235
    %v237 = vand.u32 %v57, 4294901760
    %238 = vmatpush.msra.mxu0 %v237
    %v239 = vand.u32 %v56, 4294901760
    %240 = vmatpush.msra.mxu0 %v239
    %v241 = vand.u32 %v55, 4294901760
    %242 = vmatpush.msra.mxu0 %v241
    %v243 = vand.u32 %v65, 4294901760
    %v244 = vsub.f32 %v65, %v243
    %v245 = vand.u32 %v244, 4294901760
    %246 = vmatmul.f32.gmra.mxu0 %v245
    %v247 = vpop.f32.mrf.mxu0
    %v248 = vadd.f32 %v212, %v247
    %v249 = vand.u32 %v68, 4294901760
    %v250 = vsub.f32 %v68, %v249
    %v251 = vand.u32 %v250, 4294901760
    %252 = vmatmul.f32.gmra.mxu0 %v251
    %v253 = vpop.f32.mrf.mxu0
    %v254 = vadd.f32 %v217, %v253
    %255 = vdwg.mxu0
    %256 = vmatpush.msra.mxu0 0.0
    %257 = vmatpush.msra.mxu0 0.0
    %258 = vmatpush.msra.mxu0 0.0
    %259 = vmatpush.msra.mxu0 0.0
    %260 = vmatpush.msra.mxu0 0.0
    %261 = vmatpush.msra.mxu0 0.0
    %262 = vmatpush.msra.mxu0 0.0
    %263 = vmatpush.msra.mxu0 0.0
    %v264 = vand.u32 %v62, 4294901760
    %v265 = vsub.f32 %v62, %v264
    %v266 = vand.u32 %v265, 4294901760
    %267 = vmatpush.msra.mxu0 %v266
    %v268 = vand.u32 %v61, 4294901760
    %v269 = vsub.f32 %v61, %v268
    %v270 = vand.u32 %v269, 4294901760
    %271 = vmatpush.msra.mxu0 %v270
    %v272 = vand.u32 %v60, 4294901760
    %v273 = vsub.f32 %v60, %v272
    %v274 = vand.u32 %v273, 4294901760
    %275 = vmatpush.msra.mxu0 %v274
    %v276 = vand.u32 %v59, 4294901760
    %v277 = vsub.f32 %v59, %v276
    %v278 = vand.u32 %v277, 4294901760
    %279 = vmatpush.msra.mxu0 %v278
    %v280 = vand.u32 %v58, 4294901760
    %v281 = vsub.f32 %v58, %v280
    %v282 = vand.u32 %v281, 4294901760
    %283 = vmatpush.msra.mxu0 %v282
    %v284 = vand.u32 %v57, 4294901760
    %v285 = vsub.f32 %v57, %v284
    %v286 = vand.u32 %v285, 4294901760
    %287 = vmatpush.msra.mxu0 %v286
    %v288 = vand.u32 %v56, 4294901760
    %v289 = vsub.f32 %v56, %v288
    %v290 = vand.u32 %v289, 4294901760
    %291 = vmatpush.msra.mxu0 %v290
    %v292 = vand.u32 %v55, 4294901760
    %v293 = vsub.f32 %v55, %v292
    %v294 = vand.u32 %v293, 4294901760
    %295 = vmatpush.msra.mxu0 %v294
    %v296 = vand.u32 %v65, 4294901760
    %297 = vmatmul.f32.gmra.mxu0 %v296
    %v298 = vpop.f32.mrf.mxu0
    %v299 = vadd.f32 %v248, %v298
    %v300 = vand.u32 %v68, 4294901760
    %301 = vmatmul.f32.gmra.mxu0 %v300
    %v302 = vpop.f32.mrf.mxu0
    %v303 = vadd.f32 %v254, %v302
    %304 = vdwg.mxu0
    %305 = vmatpush.msra.mxu0 0.0
    %306 = vmatpush.msra.mxu0 0.0
    %307 = vmatpush.msra.mxu0 0.0
    %308 = vmatpush.msra.mxu0 0.0
    %309 = vmatpush.msra.mxu0 0.0
    %310 = vmatpush.msra.mxu0 0.0
    %311 = vmatpush.msra.mxu0 0.0
    %312 = vmatpush.msra.mxu0 0.0
    %v313 = vand.u32 %v62, 4294901760
    %314 = vmatpush.msra.mxu0 %v313
    %v315 = vand.u32 %v61, 4294901760
    %316 = vmatpush.msra.mxu0 %v315
    %v317 = vand.u32 %v60, 4294901760
    %318 = vmatpush.msra.mxu0 %v317
    %v319 = vand.u32 %v59, 4294901760
    %320 = vmatpush.msra.mxu0 %v319
    %v321 = vand.u32 %v58, 4294901760
    %322 = vmatpush.msra.mxu0 %v321
    %v323 = vand.u32 %v57, 4294901760
    %324 = vmatpush.msra.mxu0 %v323
    %v325 = vand.u32 %v56, 4294901760
    %326 = vmatpush.msra.mxu0 %v325
    %v327 = vand.u32 %v55, 4294901760
    %328 = vmatpush.msra.mxu0 %v327
    %v329 = vand.u32 %v65, 4294901760
    %330 = vmatmul.f32.gmra.mxu0 %v329
    %v331 = vpop.f32.mrf.mxu0
    %v332 = vadd.f32 %v299, %v331
    %v333 = vand.u32 %v68, 4294901760
    %334 = vmatmul.f32.gmra.mxu0 %v333
    %v335 = vpop.f32.mrf.mxu0
    %v336 = vadd.f32 %v303, %v335
    %337 = vdwg.mxu0
    %v338 = vadd.f32 %v53, %v332
    %v339 = vadd.f32 %v54, %v336
    %340 = vst [vmem:[#allocation2] sm:$0xff] %v338
    %341 = vst [vmem:[#allocation2 + $0x8] sm:$0xff] %v339
    // Predicated region
    $region18: #{tpu_custom_call.1} parent=1 // pred_check
      %p342 = pneg %p28
    $region19: #{tpu_custom_call.1} parent=1 // pred_check_branch
      %344 = sbr.rel (%p342) target = $region21
    $region20: #{tpu_custom_call.1} parent=1 // pred_region
      %v345 = vld [vmem:[#allocation2] sm:$0xff]
      %v346 = vld [vmem:[#allocation2 + $0x8] sm:$0xff]
      %347 = vst [vmem:[#allocation6] sm:$0xff] %v345
      %348 = vst [vmem:[#allocation6 + $0x8] sm:$0xff] %v346
    $region21: #{tpu_custom_call.1} parent=1 // pred_fallthru
      _
    // Predicated region
    $region22: #{tpu_custom_call.1} parent=1 // pred_check
      _
    $region23: #{tpu_custom_call.1} parent=1 // pred_check_branch
      %350 = sbr.rel (0) target = $region25
    $region24: #{tpu_custom_call.1} parent=1 // pred_region
      %352 = vsyncadd [#allocation5], 0
      %s353 = sshll.u32 [#allocation6], 4
      %s354 = int_to_ptr.vmem [resolvable:$true] %s353
      %s355 = sshll.u32 %s2, 4
      %s356 = int_to_ptr.hbm [resolvable:$true] %s355
      %361 = dma.vmem_to_hbm [thread:$0]  %s354, 256, %s356, [#allocation5], 128, 128, 8
    $region25: #{tpu_custom_call.1} parent=1 // pred_fallthru
      _
    // Predicated region
    $region26: #{tpu_custom_call.1} parent=1 // pred_check
      _
    $region27: #{tpu_custom_call.1} parent=1 // pred_check_branch
      %363 = sbr.rel (0) target = $region29
    $region28: #{tpu_custom_call.1} parent=1 // pred_region
      %365 = dma.done [#allocation5], 256
    $region29: #{tpu_custom_call.1} parent=1 // pred_fallthru
      _
    %366 = vsyncpa [#allocation4], 1
    %367 = vsyncpa [#allocation5], 1

</llo_original>
